<compile_context>
chip_gen: v7x
topology: tpu7x:2x2x1
jax: 0.10.0
libtpu: 0.0.40
codegen_flags: <defaults>
</compile_context>

<pallas_src>
import jax
import jax.numpy as jnp
from jax.experimental import pallas as pl
from jax.experimental.pallas import tpu as pltpu

LANE = 128
SUBLANE = 8
TARGET_BLOCK_BYTES = 8 * 1024 * 1024   # ~8 MiB input block (x2 bufs x in/out = 32 MiB)
MIN_BLOCK_BYTES = 1 * 1024 * 1024      # measured HBM-roofline plateau (~85% at 1 MiB)
VMEM_LIMIT_BYTES = 48 * 1024 * 1024    # fits every generation (v7x has 64 MiB/TC)


def _swish_kernel(x_ref, o_ref):
    # fp32 opmath (PyTorch silu upcasts half dtypes); the EUP exp and the
    # casts are hidden under the DMAs at these block sizes.
    x = x_ref[...].astype(jnp.float32)
    o_ref[...] = (x * jax.nn.sigmoid(x)).astype(o_ref.dtype)


def _num_tensorcores_per_chip() -> int:
    """v7x has 2 TensorCores per chip; v5e/v6e have 1."""
    try:
        kind = jax.devices()[0].device_kind.lower()
    except Exception:
        return 1
    return 2 if ("v7" in kind or "7x" in kind) else 1


def _block_granule(itemsize: int) -> int:
    # One full packed (8,128) tile worth of elements for this dtype.
    pack = max(1, 4 // max(1, itemsize))
    return SUBLANE * LANE * pack


def _pick_block_elems(n: int, itemsize: int, num_cores: int) -> int:
    """MiB-scale, tile-aligned 1-D block; always a legal TPU block shape."""
    gran = _block_granule(itemsize)
    target = max(gran, (TARGET_BLOCK_BYTES // itemsize) // gran * gran)
    plateau = max(gran, (MIN_BLOCK_BYTES // itemsize) // gran * gran)
    # Single-TC chips only need 2 steps for double-buffer overlap; on v7x ask
    # for >=4 so the parallel axis can feed both TensorCores.
    min_steps = 4 if num_cores > 1 else 2
    want = -(-n // min_steps)            # cdiv(n, min_steps)
    want = -(-want // gran) * gran       # round up to a full tile
    blk = min(target, max(plateau, want))
    if blk >= n:
        # Single block spanning the whole (possibly ragged) array: a block
        # equal to the full array dim is always legal.
        return n
    return blk


def _swish_flat_1d(flat: jax.Array, block_elems: int) -> jax.Array:
    """One lane-dense 1-D pallas_call over the full flat array (ragged OK)."""
    n = flat.shape[0]
    return pl.pallas_call(
        _swish_kernel,
        out_shape=jax.ShapeDtypeStruct((n,), flat.dtype),
        grid_spec=pltpu.PrefetchScalarGridSpec(
            num_scalar_prefetch=0,
            grid=(pl.cdiv(n, block_elems),),
            in_specs=[pl.BlockSpec((block_elems,), lambda i: (i,))],
            out_specs=pl.BlockSpec((block_elems,), lambda i: (i,)),
        ),
        # TODO(synk): callers that can donate `x` could add
        # input_output_aliases={0: 0} here to halve HBM footprint.
        compiler_params=pltpu.CompilerParams(
            dimension_semantics=("parallel",),
            vmem_limit_bytes=VMEM_LIMIT_BYTES,
        ),
    )(flat)


def _swish_2d(x2d: jax.Array, tile_rows: int) -> jax.Array:
    rows, lane = x2d.shape
    return pl.pallas_call(
        _swish_kernel,
        out_shape=jax.ShapeDtypeStruct((rows, lane), x2d.dtype),
        grid_spec=pltpu.PrefetchScalarGridSpec(
            num_scalar_prefetch=0,
            grid=(pl.cdiv(rows, tile_rows),),
            in_specs=[pl.BlockSpec((tile_rows, lane), lambda i: (i, 0))],
            out_specs=pl.BlockSpec((tile_rows, lane), lambda i: (i, 0)),
        ),
        compiler_params=pltpu.CompilerParams(
            dimension_semantics=("parallel",),
            vmem_limit_bytes=VMEM_LIMIT_BYTES,
        ),
    )(x2d)


def _swish_fallback_2d(flat: jax.Array) -> jax.Array:
    """Proven 2-D path (prefix kernel + tiny jnp tail), used only if the 1-D
    ragged lowering is rejected on some backend."""
    n = flat.shape[0]
    itemsize = jnp.dtype(flat.dtype).itemsize
    rows = n // LANE
    tail = n - rows * LANE
    blk = _pick_block_elems(rows * LANE, itemsize, _num_tensorcores_per_chip())
    tile_rows = rows if blk >= rows * LANE else blk // LANE
    if tail == 0:
        return _swish_2d(flat.reshape(rows, LANE), tile_rows).reshape(-1)
    main = rows * LANE
    out_main = _swish_2d(flat[:main].reshape(rows, LANE), tile_rows).reshape(-1)
    t = flat[main:].astype(jnp.float32)
    return jnp.concatenate([out_main, (t * jax.nn.sigmoid(t)).astype(flat.dtype)])


def swish(x: jax.Array) -> jax.Array:
    """Elementwise swish matching torch: x * torch.sigmoid(x). Any shape."""
    orig_shape = x.shape
    n = x.size
    if n == 0:
        return x

    flat = x.reshape(-1)                 # zero-copy for contiguous arrays
    if n < LANE:
        # Fewer than one lane row of elements: not worth a kernel launch.
        xf = flat.astype(jnp.float32)
        return (xf * jax.nn.sigmoid(xf)).astype(x.dtype).reshape(orig_shape)

    itemsize = jnp.dtype(x.dtype).itemsize
    blk = _pick_block_elems(n, itemsize, _num_tensorcores_per_chip())
    try:
        out_flat = _swish_flat_1d(flat, blk)
    except Exception:
        # Hedge recommended by the perf review: if 1-D ragged lowering is
        # rejected, fall back to the 2-D prefix + tail implementation.
        out_flat = _swish_fallback_2d(flat)
    return out_flat.reshape(orig_shape)


if __name__ == "__main__":
    def _ref(v):
        v32 = v.astype(jnp.float32)
        return (v32 * jax.nn.sigmoid(v32)).astype(v.dtype)

    # NCHW input, small shape consistent with EfficientNet-style usage.
    x = jax.random.normal(jax.random.PRNGKey(0), (2, 4, 16, 16), dtype=jnp.float32)
    out = jax.block_until_ready(swish(x))
    assert out.shape == x.shape and out.dtype == x.dtype
    assert jnp.allclose(out, _ref(x), atol=1e-6, rtol=1e-6)

    # Non-128-divisible element count: single ragged full-array block.
    x2 = jax.random.normal(jax.random.PRNGKey(1), (3, 5, 7, 3), dtype=jnp.float32)
    out2 = jax.block_until_ready(swish(x2))
    assert out2.shape == x2.shape and out2.dtype == x2.dtype
    assert jnp.allclose(out2, _ref(x2), atol=1e-6, rtol=1e-6)

    # Multi-step grid with a masked ragged final block (no slice/concat pass).
    x3 = jax.random.normal(jax.random.PRNGKey(2), (2, 4, 183, 183), dtype=jnp.float32)
    out3 = jax.block_until_ready(swish(x3))
    assert out3.shape == x3.shape and out3.dtype == x3.dtype
    assert jnp.allclose(out3, _ref(x3), atol=1e-6, rtol=1e-6)

    print("KERNEL_OK")
</pallas_src>

<mosaic_0001>
module attributes {stable_mosaic.version = 11 : i64} {
  func.func @_swish_kernel(%arg0: i32, %arg1: memref<16x128xf32, #tpu.memory_space<vmem>>, %arg2: memref<16x128xf32, #tpu.memory_space<vmem>>) attributes {dimension_semantics = [#tpu.dimension_semantics<parallel>], iteration_bounds = array<i64: 1>, scalar_prefetch = 0 : i64, scratch_operands = 0 : i64, tpu.core_type = #tpu.core_type<tc>, window_params = [{transform_indices = @transform_0, window_bounds = array<i64: 16, 128>}, {transform_indices = @transform_1, window_bounds = array<i64: 16, 128>}]} {
    %c0 = arith.constant 0 : index
    %c0_0 = arith.constant 0 : index
    %0 = vector.load %arg1[%c0, %c0_0] : memref<16x128xf32, #tpu.memory_space<vmem>>, vector<16x128xf32>
    %1 = arith.negf %0 : vector<16x128xf32>
    %2 = math.exp %1 : vector<16x128xf32>
    %cst = arith.constant 1.000000e+00 : f32
    %3 = vector.broadcast %cst : f32 to vector<16x128xf32>
    %4 = arith.addf %3, %2 : vector<16x128xf32>
    %5 = arith.divf %3, %4 : vector<16x128xf32>
    %6 = arith.mulf %0, %5 : vector<16x128xf32>
    %c0_1 = arith.constant 0 : index
    %c0_2 = arith.constant 0 : index
    %7 = vector.load %arg2[%c0_1, %c0_2] : memref<16x128xf32, #tpu.memory_space<vmem>>, vector<16x128xf32>
    tpu.vector_store %arg2[%c0_1, %c0_2], %6 {strides = array<i32>} : memref<16x128xf32, #tpu.memory_space<vmem>>, vector<16x128xf32>,
    return
  }
  func.func @transform_0(%arg0: i32) -> (i32, i32) {
    %c0_i32 = arith.constant 0 : i32
    %c0_i32_0 = arith.constant 0 : i32
    return %arg0, %c0_i32 : i32, i32
  }
  func.func @transform_1(%arg0: i32) -> (i32, i32) {
    %c0_i32 = arith.constant 0 : i32
    %c0_i32_0 = arith.constant 0 : i32
    return %arg0, %c0_i32 : i32, i32
  }
}

</mosaic_0001>

<llo_original>
// kernel: tpu_custom_call.1
$region0: #{tpu_custom_call.1}
  #allocation0 [shape = 'u32[]', space=smem, size = 0x4, offset = 0x4, fixed_abs, tag = 'smem constant byte address 0x4 - core index']
  #allocation1 [shape = 'u32[144,128]{1,0:T(1,128)}', space=vmem, size = 0x12000, scoped, tag = 'internal scratch']
  %s0 = inlined_call_operand.hbm [shape: f32[16,128], index: 0, kind: input, shape index: {}]
  %s1 = inlined_call_operand.hbm [shape: f32[16,128], index: 1, kind: output, shape index: {}]
  %s2 = sld [smem:[#allocation0]]
  $region18: #{tpu_custom_call.1} parent=0
    _
  %s4 = ssub.s32 1, %s2
  %s5 = scalar_select 0, %s4, %s2
  $region1: #{tpu_custom_call.1} parent=0
    #allocation2 [shape = 'u8[8192]{0}', space=vmem, size = 0x2000, scoped, tag = 'input window, operand 0, single buffered']
    #allocation3 [shape = 's32[1]{0}', space=sflag, size = 0x4, scoped, tag = 'scoped memory for tpu_custom_call.1']
    #allocation4 [shape = 's32[1]{0}', space=sflag, size = 0x4, scoped, tag = 'scoped memory for tpu_custom_call.1']
    #allocation5 [shape = 'u8[8192]{0}', space=vmem, size = 0x2000, scoped, tag = 'output window, operand 0, single buffered']
    %6 = vsyncpa [#allocation3], 0
    %7 = vsyncpa [#allocation4], 0
    // Predicated region
    $region2: #{tpu_custom_call.1} parent=1 // pred_check
      _
    $region3: #{tpu_custom_call.1} parent=1 // pred_check_branch
      %9 = sbr.rel (0) target = $region5
    $region4: #{tpu_custom_call.1} parent=1 // pred_region
      %s11 = ssub.s32 256, 256
      %12 = vsyncadd [#allocation3], %s11
      %s13 = sshll.u32 [#allocation2], 4
      %s14 = int_to_ptr.vmem [resolvable:$true] %s13
      %19 = dma.hbm_to_vmem [thread:$0]  %s0, 256, %s14, [#allocation3], 128, 128, 8
    $region5: #{tpu_custom_call.1} parent=1 // pred_fallthru
      _
    // Predicated region
    $region6: #{tpu_custom_call.1} parent=1 // pred_check
      _
    $region7: #{tpu_custom_call.1} parent=1 // pred_check_branch
      %21 = sbr.rel (0) target = $region9
    $region8: #{tpu_custom_call.1} parent=1 // pred_region
      %22 = dma.done [#allocation3], 256
    $region9: #{tpu_custom_call.1} parent=1 // pred_fallthru
      _
    %v23 = vld [vmem:[#allocation2] sm:$0xff]
    %v24 = vld [vmem:[#allocation2 + $0x8] sm:$0xff]
    %v25 = vxor.u32 %v23, 2147483648
    %v26 = vxor.u32 %v24, 2147483648
    %v27 = vmul.f32 %v25, 1.442695
    %v28 = vpow.pop %v27
    %v29 = vmul.f32 %v26, 1.442695
    %v30 = vpow.pop %v29
    %v31 = vadd.f32 %v28, 1.0
    %v32 = vadd.f32 %v30, 1.0
    %v33 = vrcp.pop %v31
    %v34 = vmul.f32 1.0, %v33
    %v35 = vrcp.pop %v32
    %v36 = vmul.f32 1.0, %v35
    %v37 = vmul.f32 %v23, %v34
    %v38 = vmul.f32 %v24, %v36
    %39 = vst [vmem:[#allocation5] sm:$0xff] %v37
    %40 = vst [vmem:[#allocation5 + $0x8] sm:$0xff] %v38
    // Predicated region
    $region10: #{tpu_custom_call.1} parent=1 // pred_check
      _
    $region11: #{tpu_custom_call.1} parent=1 // pred_check_branch
      %42 = sbr.rel (0) target = $region13
    $region12: #{tpu_custom_call.1} parent=1 // pred_region
      %s44 = ssub.s32 256, 256
      %45 = vsyncadd [#allocation4], %s44
      %s46 = sshll.u32 [#allocation5], 4
      %s47 = int_to_ptr.vmem [resolvable:$true] %s46
      %52 = dma.vmem_to_hbm [thread:$0]  %s47, 256, %s1, [#allocation4], 128, 128, 8
    $region13: #{tpu_custom_call.1} parent=1 // pred_fallthru
      _
    // Predicated region
    $region14: #{tpu_custom_call.1} parent=1 // pred_check
      _
    $region15: #{tpu_custom_call.1} parent=1 // pred_check_branch
      %54 = sbr.rel (0) target = $region17
    $region16: #{tpu_custom_call.1} parent=1 // pred_region
      %55 = dma.done [#allocation4], 256
    $region17: #{tpu_custom_call.1} parent=1 // pred_fallthru
      _
    %56 = vsyncpa [#allocation3], 1
    %57 = vsyncpa [#allocation4], 1

</llo_original>
